<compile_context>
chip_gen: v7x
topology: tpu7x:2x2x1
jax: 0.10.0
libtpu: 0.0.40
codegen_flags: <defaults>
</compile_context>

<pallas_src>
import functools
import math

import jax
import jax.numpy as jnp
from jax.experimental import pallas as pl
from jax.experimental.pallas import tpu as pltpu


def _round_up(x, m):
    return (x + m - 1) // m * m


def _sublane_multiple(dtype):
    # Native sublane packing: f32 -> 8, bf16/f16 -> 16, int8/fp8 -> 32.
    return max(8, 32 // jnp.dtype(dtype).itemsize)


def _vmem_capacity_bytes():
    """Physical VMEM of the local TPU; conservative fallback if unqueryable."""
    try:
        info = pltpu.get_tpu_info()
        for name in ("vmem_capacity_bytes", "vmem_bytes", "vmem_size_bytes"):
            val = getattr(info, name, None)
            if val:
                return int(val)
    except Exception:
        pass
    return 64 * 1024 * 1024  # v7x physical VMEM (smallest across v5e/v6e/v7x)


def make_pe_table(d_model, max_len=5000, dtype=jnp.float32):
    """Sin/cos positional-encoding table, shaped (max_len, d_model).

    Built once at setup and pre-cast to the model dtype; 2-D so the per-tile
    block is sublane-dense (no padded size-1 dim)."""
    if d_model % 2 != 0:
        raise ValueError(f"d_model must be even (got {d_model}); the sin/cos "
                         "interleave (same as the PyTorch original) requires it.")
    position = jnp.arange(max_len, dtype=jnp.float32)[:, None]                 # (max_len, 1)
    div_term = jnp.exp(
        jnp.arange(0, d_model, 2, dtype=jnp.float32) * (-math.log(10000.0) / d_model)
    )                                                                          # (d_model//2,)
    angles = position * div_term                                               # (max_len, d/2)
    pe = jnp.zeros((max_len, d_model), dtype=jnp.float32)
    pe = pe.at[:, 0::2].set(jnp.sin(angles))
    pe = pe.at[:, 1::2].set(jnp.cos(angles))
    return pe.astype(dtype)                                                    # (max_len, D)


def _posenc_kernel(x_ref, pe_ref, o_ref, *, batch):
    # x_ref / o_ref: (ts, batch*D); pe_ref: (ts, D). Add in the input dtype.
    pe = pe_ref[...]
    if batch > 1:
        # Static lane-axis tiling of the (ts, D) pe tile across the batch; for
        # D % 128 == 0 this is pure vreg placement (no cross-lane shuffles).
        pe = jnp.concatenate([pe] * batch, axis=-1)
    o_ref[...] = (x_ref[...] + pe).astype(o_ref.dtype)


def _pick_seq_tile(S, B, D, x_dtype, pe_dtype, tile_budget_bytes):
    """Largest seq tile whose *padded* double-buffered footprint fits the budget."""
    xsz = jnp.dtype(x_dtype).itemsize
    pesz = jnp.dtype(pe_dtype).itemsize
    sub = _sublane_multiple(x_dtype)
    lane = 128
    # Padding-aware per-sequence-row bytes of one tile set: lane dim padded to
    # 128; the sublane dim (ts itself) is kept a multiple of `sub` below.
    x_row = _round_up(B * D, lane) * xsz          # one padded row of x (or out) tile
    pe_row = _round_up(D, lane) * pesz
    # double-buffered (x-in + out + pe) plus ~2 x-rows of in-kernel temporaries.
    bytes_per_row = 2 * (2 * x_row + pe_row) + 2 * x_row

    ts = (tile_budget_bytes // bytes_per_row) // sub * sub
    ts = max(sub, ts)
    ts = min(ts, _round_up(S, sub))
    # Keep >= 2 sequence tiles when S allows so the "parallel" grid axis can
    # actually split across v7x's two TensorCores (harmless on v5e/v6e).
    if ts >= _round_up(S, sub) and S > sub:
        ts = _round_up(pl.cdiv(S, 2), sub)
    return ts


def positional_encoding(x, pe_table, *, donate_x=False):
    """x: (S, B, D) seq-first. Returns x + pe_table[:S] broadcast over batch.

    Dropout from the PyTorch module is eval-mode identity here."""
    if x.ndim != 3:
        raise ValueError(f"x must be (seq, batch, d_model), got {x.shape}")
    S, B, D = x.shape
    if pe_table.ndim != 2 or pe_table.shape[1] != D:
        raise ValueError(f"pe_table must have shape (max_len, {D}), got {pe_table.shape}")
    if S > pe_table.shape[0]:
        raise ValueError(f"sequence length {S} exceeds pe table max_len {pe_table.shape[0]}")

    vmem_cap = _vmem_capacity_bytes()
    tile_budget = min(vmem_cap // 2, 56 * 1024 * 1024)          # ~32 MiB v7x, ~56 MiB v5e/v6e
    vmem_limit = int(min((vmem_cap * 3) // 4, 100 * 1024 * 1024))

    ts = _pick_seq_tile(S, B, D, x.dtype, pe_table.dtype, tile_budget)
    grid = (pl.cdiv(S, ts),)

    # Free view: merges the trailing contiguous (B, D) dims of a row-major array,
    # putting seq on sublanes and batch*d_model on lanes (lane-dense stores).
    x2 = x.reshape(S, B * D)

    out2 = pl.pallas_call(
        functools.partial(_posenc_kernel, batch=B),
        out_shape=jax.ShapeDtypeStruct((S, B * D), x.dtype),
        grid_spec=pltpu.PrefetchScalarGridSpec(
            num_scalar_prefetch=0,
            grid=grid,
            in_specs=[
                # x tile: sublane dim = ts (multiple of 8/16/32), lane dim = B*D (full dim).
                pl.BlockSpec((ts, B * D), lambda i: (i, 0)),
                # pe tile: 2-D and sublane-dense (no padded size-1 dim).
                pl.BlockSpec((ts, D), lambda i: (i, 0)),
            ],
            out_specs=pl.BlockSpec((ts, B * D), lambda i: (i, 0)),
        ),
        compiler_params=pltpu.CompilerParams(
            dimension_semantics=("parallel",),   # seq tiles split across v7x's 2 TCs
            vmem_limit_bytes=vmem_limit,
        ),
        input_output_aliases=({0: 0} if donate_x else {}),
    )(x2, pe_table)

    return out2.reshape(S, B, D)


if __name__ == "__main__":
    k1, k2 = jax.random.split(jax.random.PRNGKey(0))

    # Case 1: small demo shape, seq-first like the PyTorch module.
    S, B, D = 8, 2, 32
    x = jax.random.normal(k1, (S, B, D), dtype=jnp.float32)
    pe_table = make_pe_table(d_model=D, max_len=5000, dtype=x.dtype)
    out = jax.block_until_ready(positional_encoding(x, pe_table))
    ref = x + pe_table[:S][:, None, :]
    assert out.shape == (S, B, D)
    assert jnp.allclose(out, ref, atol=1e-6, rtol=1e-6), "f32 mismatch vs reference"

    # Case 2: bf16, multi-tile grid with a ragged last block (exercises masking
    # and the >=2-tile split for v7x).
    S2, B2, D2 = 40, 4, 128
    x_b = jax.random.normal(k2, (S2, B2, D2), dtype=jnp.bfloat16)
    pe_b = make_pe_table(d_model=D2, max_len=5000, dtype=jnp.bfloat16)
    out_b = jax.block_until_ready(positional_encoding(x_b, pe_b))
    ref_b = x_b + pe_b[:S2][:, None, :]
    assert out_b.shape == (S2, B2, D2)
    assert jnp.allclose(out_b.astype(jnp.float32), ref_b.astype(jnp.float32),
                        atol=5e-2, rtol=5e-2), "bf16 mismatch vs reference"

    print("KERNEL_OK")
</pallas_src>

<mosaic_0001>
module attributes {stable_mosaic.version = 11 : i64} {
  func.func @_posenc_kernel(%arg0: i32, %arg1: memref<8x64xf32, #tpu.memory_space<vmem>>, %arg2: memref<8x32xf32, #tpu.memory_space<vmem>>, %arg3: memref<8x64xf32, #tpu.memory_space<vmem>>) attributes {dimension_semantics = [#tpu.dimension_semantics<parallel>], iteration_bounds = array<i64: 1>, scalar_prefetch = 0 : i64, scratch_operands = 0 : i64, tpu.core_type = #tpu.core_type<tc>, window_params = [{transform_indices = @transform_0, window_bounds = array<i64: 8, 64>}, {transform_indices = @transform_1, window_bounds = array<i64: 8, 32>}, {transform_indices = @transform_2, window_bounds = array<i64: 8, 64>}]} {
    %c0 = arith.constant 0 : index
    %c0_0 = arith.constant 0 : index
    %0 = vector.load %arg2[%c0, %c0_0] : memref<8x32xf32, #tpu.memory_space<vmem>>, vector<8x32xf32>
    %1 = tpu.concatenate %0, %0 in 1 : vector<8x32xf32>, vector<8x32xf32> -> vector<8x64xf32>
    %c0_1 = arith.constant 0 : index
    %c0_2 = arith.constant 0 : index
    %2 = vector.load %arg1[%c0_1, %c0_2] : memref<8x64xf32, #tpu.memory_space<vmem>>, vector<8x64xf32>
    %3 = arith.addf %2, %1 : vector<8x64xf32>
    %c0_3 = arith.constant 0 : index
    %c0_4 = arith.constant 0 : index
    %4 = vector.load %arg3[%c0_3, %c0_4] : memref<8x64xf32, #tpu.memory_space<vmem>>, vector<8x64xf32>
    tpu.vector_store %arg3[%c0_3, %c0_4], %3 {strides = array<i32>} : memref<8x64xf32, #tpu.memory_space<vmem>>, vector<8x64xf32>,
    return
  }
  func.func @transform_0(%arg0: i32) -> (i32, i32) {
    %c0_i32 = arith.constant 0 : i32
    %c0_i32_0 = arith.constant 0 : i32
    return %arg0, %c0_i32 : i32, i32
  }
  func.func @transform_1(%arg0: i32) -> (i32, i32) {
    %c0_i32 = arith.constant 0 : i32
    %c0_i32_0 = arith.constant 0 : i32
    return %arg0, %c0_i32 : i32, i32
  }
  func.func @transform_2(%arg0: i32) -> (i32, i32) {
    %c0_i32 = arith.constant 0 : i32
    %c0_i32_0 = arith.constant 0 : i32
    return %arg0, %c0_i32 : i32, i32
  }
}

</mosaic_0001>

<llo_original>
// kernel: tpu_custom_call.1
$region0: #{tpu_custom_call.1}
  #allocation0 [shape = 'u32[]', space=smem, size = 0x4, offset = 0x4, fixed_abs, tag = 'smem constant byte address 0x4 - core index']
  #allocation1 [shape = 'u32[144,128]{1,0:T(1,128)}', space=vmem, size = 0x12000, scoped, tag = 'internal scratch']
  %s0 = inlined_call_operand.vmem [shape: f32[8,64], index: 0, kind: input, shape index: {}]
  %s1 = inlined_call_operand.vmem [shape: f32[5000,32], index: 1, kind: input, shape index: {}]
  %s2 = inlined_call_operand.hbm [shape: f32[8,64], index: 2, kind: output, shape index: {}]
  %s3 = sld [smem:[#allocation0]]
  $region18: #{tpu_custom_call.1} parent=0
    _
  %s5 = ssub.s32 1, %s3
  %s6 = scalar_select 0, %s5, %s3
  $region1: #{tpu_custom_call.1} parent=0
    #allocation2 [shape = 'u8[4096]{0}', space=vmem, size = 0x1000, scoped, tag = 'output window, operand 0, single buffered']
    #allocation3 [shape = 's32[1]{0}', space=sflag, size = 0x4, scoped, tag = 'scoped memory for tpu_custom_call.1']
    %7 = vsyncpa [#allocation3], 0
    // Predicated region
    $region2: #{tpu_custom_call.1} parent=1 // pred_check
      _
    $region3: #{tpu_custom_call.1} parent=1 // pred_check_branch
      %9 = sbr.rel (0) target = $region5
    $region4: #{tpu_custom_call.1} parent=1 // pred_region
      _
    $region5: #{tpu_custom_call.1} parent=1 // pred_fallthru
      _
    // Predicated region
    $region6: #{tpu_custom_call.1} parent=1 // pred_check
      _
    $region7: #{tpu_custom_call.1} parent=1 // pred_check_branch
      %11 = sbr.rel (0) target = $region9
    $region8: #{tpu_custom_call.1} parent=1 // pred_region
      _
    $region9: #{tpu_custom_call.1} parent=1 // pred_fallthru
      _
    %v12 = vld [vmem:[%s1] sm:$0xff]
    %14 = vrot.lane.b32.xlu0 %v12, 32
    %v15 = vpop.permute.xlu0 %14
    %vm17 = vcmask 261120
    %v18 = vsel %vm17, %v12, %v15
    %v19 = vld [vmem:[%s0] sm:$0xff]
    %v20 = vadd.f32 %v19, %v18
    %vm21 = vcmask 523264
    %22 = vst.msk [vmem:[#allocation2] sm:$0xff] %vm21, %v20
    // Predicated region
    $region10: #{tpu_custom_call.1} parent=1 // pred_check
      _
    $region11: #{tpu_custom_call.1} parent=1 // pred_check_branch
      %24 = sbr.rel (0) target = $region13
    $region12: #{tpu_custom_call.1} parent=1 // pred_region
      %s26 = ssub.s32 128, 128
      %27 = vsyncadd [#allocation3], %s26
      %s29 = sshll.u32 [#allocation2], 4
      %s30 = int_to_ptr.vmem [resolvable:$true] %s29
      %32 = dma.vmem_to_hbm [thread:$0]  %s30, 128, %s2, [#allocation3]
    $region13: #{tpu_custom_call.1} parent=1 // pred_fallthru
      _
    // Predicated region
    $region14: #{tpu_custom_call.1} parent=1 // pred_check
      _
    $region15: #{tpu_custom_call.1} parent=1 // pred_check_branch
      %34 = sbr.rel (0) target = $region17
    $region16: #{tpu_custom_call.1} parent=1 // pred_region
      %35 = dma.done [#allocation3], 128
    $region17: #{tpu_custom_call.1} parent=1 // pred_fallthru
      _
    %36 = vsyncpa [#allocation3], 1

</llo_original>
